<compile_context>
chip_gen: v7x
topology: tpu7x:2x2x1
jax: 0.10.0
libtpu: 0.0.40
codegen_flags: <defaults>
</compile_context>

<pallas_src>
import jax
import jax.numpy as jnp
from jax.experimental import pallas as pl
from jax.experimental.pallas import tpu as pltpu

NUM_TOOLS = 6
NUM_VERBS = 10

# Fixed instrument-verb compatibility matrix (same values as the PyTorch buffer).
_MAPPING_ROWS = (
    (1, 1, 1, 1, 1, 0, 0, 0, 0, 0),
    (1, 1, 1, 0, 1, 1, 0, 0, 0, 0),
    (1, 1, 0, 0, 1, 1, 1, 0, 0, 0),
    (1, 0, 0, 0, 1, 1, 1, 0, 0, 0),
    (1, 0, 0, 0, 0, 0, 0, 1, 0, 0),
    (1, 1, 0, 0, 1, 0, 0, 0, 1, 1),
)
_MAPPING = jnp.array(_MAPPING_ROWS, dtype=jnp.float32)  # (6, 10)

# Rows packed per lane-dense "group": 64 rows * 6 tools = 384 input lanes,
# 64 rows * 10 verbs = 640 output lanes -- both multiples of 128.
GROUP = 64
K_DENSE = GROUP * NUM_TOOLS   # 384
N_DENSE = GROUP * NUM_VERBS   # 640

# Max groups per grid step: 1024 groups = 65536 original rows.
#   input tile  1024*384*4 = 1.5 MiB, output tile 1024*640*4 = 2.5 MiB,
#   double-buffered + ~1 MiB resident map  ->  ~10 MiB VMEM, fine everywhere.
_MAX_TILE_GROUPS = 1024
_VMEM_LIMIT_BYTES = 32 * 1024 * 1024

# Below this many rows, a single fused XLA matmul beats pallas_call launch cost.
_DEFAULT_MIN_PALLAS_BATCH = 4096


def _iv_mapping_kernel(x_ref, w_ref, o_ref):
    """One MXU matmul per tile: (TG, 384) @ (384, 640) -> (TG, 640), f32 acc.

    w_ref is the block-diagonal replication of the 6x10 mapping; it is resident
    in VMEM (constant index_map) so only the x/o streams touch HBM per step.
    """
    o_ref[...] = jnp.dot(x_ref[...], w_ref[...],
                         preferred_element_type=jnp.float32)


def _pick_tile_groups(num_groups: int, override: int | None) -> int:
    """Choose the per-step group tile (sublane dim of the blocks)."""
    if override is not None:
        # Clamp/validate user override: <= num_groups, and a multiple of 8
        # unless it equals the full group dimension.
        tg = max(1, min(int(override), num_groups))
        if tg != num_groups:
            tg = max(8, (tg // 8) * 8)
            if tg > num_groups:
                tg = num_groups
        return tg
    if num_groups <= _MAX_TILE_GROUPS:
        if num_groups >= 16:
            # Prefer a grid of length >= 2 so both v7x TensorCores get work
            # (the batch axis is marked "parallel").
            tg = 8 * pl.cdiv(pl.cdiv(num_groups, 2), 8)
            return min(tg, num_groups)
        return num_groups  # single full-dim block (exempt from the 8-row rule)
    return _MAX_TILE_GROUPS


def instrument_verb_mapping(
    tool_probabilities: jax.Array,
    *,
    tile_groups: int | None = None,
    min_pallas_batch: int = _DEFAULT_MIN_PALLAS_BATCH,
) -> jax.Array:
    """Apply instrument-verb compatibility mapping (== torch.mm(probs, mapping)).

    Args:
        tool_probabilities: [batch, NUM_TOOLS] tool probabilities.
        tile_groups: optional per-grid-step tile size in 64-row groups
            (testing / tuning).
        min_pallas_batch: batches smaller than this use a plain XLA matmul
            (set to 0 to force the Pallas kernel).

    Returns:
        [batch, NUM_VERBS] float32 verb compatibility scores.
    """
    assert tool_probabilities.ndim == 2
    assert tool_probabilities.shape[1] == NUM_TOOLS
    batch = tool_probabilities.shape[0]
    x = tool_probabilities.astype(jnp.float32)

    # Small-batch fast path: the module's typical usage (batch ~ a few) is far
    # cheaper as a single fused XLA op than a pallas_call launch.
    if batch < min_pallas_batch:
        return jnp.matmul(x, _MAPPING)

    # ---- lane-dense block-diagonal reformulation ----
    num_groups = pl.cdiv(batch, GROUP)
    padded = num_groups * GROUP
    if padded != batch:
        # Zero-pad to a whole number of 64-row groups (padded rows produce
        # zero outputs and are sliced off below).
        x = jnp.pad(x, ((0, padded - batch), (0, 0)))
    # Row-major, no-copy reshape: group g holds rows [g*64, (g+1)*64).
    x_dense = x.reshape(num_groups, K_DENSE)
    # 64 copies of the 6x10 map along the diagonal -> (384, 640) f32.
    w_dense = jnp.kron(jnp.eye(GROUP, dtype=jnp.float32), _MAPPING)

    tg = _pick_tile_groups(num_groups, tile_groups)
    grid = (pl.cdiv(num_groups, tg),)

    out_dense = pl.pallas_call(
        _iv_mapping_kernel,
        out_shape=jax.ShapeDtypeStruct((num_groups, N_DENSE), jnp.float32),
        grid=grid,
        in_specs=[
            # Streaming batch tiles (partial last block is safe: rows are fully
            # independent, so garbage padding rows never contaminate valid
            # output -- Pallas clips the writeback).
            pl.BlockSpec((tg, K_DENSE), lambda i: (i, 0)),
            # Mapping: same block every step -> fetched once, resident in VMEM.
            pl.BlockSpec((K_DENSE, N_DENSE), lambda i: (0, 0)),
        ],
        out_specs=pl.BlockSpec((tg, N_DENSE), lambda i: (i, 0)),
        compiler_params=pltpu.CompilerParams(
            # Batch tiles are independent -> shard the grid across TensorCores
            # on megacore parts (v7x); no-op on single-TC v5e/v6e.
            dimension_semantics=("parallel",),
            vmem_limit_bytes=_VMEM_LIMIT_BYTES,
        ),
    )(x_dense, w_dense)

    return out_dense.reshape(padded, NUM_VERBS)[:batch]


if __name__ == "__main__":
    key = jax.random.PRNGKey(0)
    k0, k1 = jax.random.split(key)

    # Case 1: the module's typical tiny batch, forced through the Pallas kernel
    # (min_pallas_batch=0): pads 2 -> 64 rows = 1 group, single-step grid.
    batch = 2
    tool_probs = jax.nn.sigmoid(
        jax.random.normal(k0, (batch, NUM_TOOLS), dtype=jnp.float32))
    out = jax.block_until_ready(
        instrument_verb_mapping(tool_probs, min_pallas_batch=0))
    ref = tool_probs @ _MAPPING
    assert out.shape == (batch, NUM_VERBS)
    # atol=1e-3 tolerates any f32-matmul pass-count choice; with 0/1 weights the
    # real error is ~1 ulp, while an indexing bug would be O(0.1-1).
    assert jnp.allclose(out, ref, atol=1e-3), "mismatch vs reference (pallas, batch=2)"

    # Default route for tiny batches is the XLA fast path; check it too.
    out_fast = jax.block_until_ready(instrument_verb_mapping(tool_probs))
    assert jnp.allclose(out_fast, ref, atol=1e-5), "mismatch vs reference (fast path)"

    # Case 2: non-multiple-of-64 batch exercising padding + a multi-step grid
    # (600 rows -> 10 groups; tile_groups=8 -> grid of 2 with a partial block).
    batch2 = 600
    tool_probs2 = jax.nn.sigmoid(
        jax.random.normal(k1, (batch2, NUM_TOOLS), dtype=jnp.float32))
    out2 = jax.block_until_ready(
        instrument_verb_mapping(tool_probs2, tile_groups=8, min_pallas_batch=0))
    ref2 = tool_probs2 @ _MAPPING
    assert out2.shape == (batch2, NUM_VERBS)
    assert jnp.allclose(out2, ref2, atol=1e-3), "mismatch vs reference (tiled, batch=600)"

    print("KERNEL_OK")
</pallas_src>

<mosaic_0001>
module attributes {stable_mosaic.version = 11 : i64} {
  func.func @_iv_mapping_kernel(%arg0: i32, %arg1: memref<1x384xf32, #tpu.memory_space<vmem>>, %arg2: memref<384x640xf32, #tpu.memory_space<vmem>>, %arg3: memref<1x640xf32, #tpu.memory_space<vmem>>) attributes {dimension_semantics = [#tpu.dimension_semantics<parallel>], iteration_bounds = array<i64: 1>, scalar_prefetch = 0 : i64, scratch_operands = 0 : i64, tpu.core_type = #tpu.core_type<tc>, window_params = [{transform_indices = @transform_0, window_bounds = array<i64: 1, 384>}, {pipeline_mode = #tpu.pipeline_mode<synchronous>, transform_indices = @transform_1, window_bounds = array<i64: 384, 640>}, {transform_indices = @transform_2, window_bounds = array<i64: 1, 640>}]} {
    %c0 = arith.constant 0 : index
    %c0_0 = arith.constant 0 : index
    %0 = vector.load %arg1[%c0, %c0_0] : memref<1x384xf32, #tpu.memory_space<vmem>>, vector<1x384xf32>
    %c0_1 = arith.constant 0 : index
    %c0_2 = arith.constant 0 : index
    %1 = vector.load %arg2[%c0_1, %c0_2] : memref<384x640xf32, #tpu.memory_space<vmem>>, vector<384x640xf32>
    %cst = arith.constant dense<0.000000e+00> : vector<1x640xf32>
    %2 = tpu.matmul %0, %1, %cst {dimension_numbers = #tpu.dot_dimension_numbers<[1], [0], [0], [1], [0, 0, 1, 1], [], []>} : vector<1x384xf32>, vector<384x640xf32>, vector<1x640xf32> -> vector<1x640xf32>
    %c0_3 = arith.constant 0 : index
    %c0_4 = arith.constant 0 : index
    %3 = vector.load %arg3[%c0_3, %c0_4] : memref<1x640xf32, #tpu.memory_space<vmem>>, vector<1x640xf32>
    tpu.vector_store %arg3[%c0_3, %c0_4], %2 {strides = array<i32>} : memref<1x640xf32, #tpu.memory_space<vmem>>, vector<1x640xf32>,
    return
  }
  func.func @transform_0(%arg0: i32) -> (i32, i32) {
    %c0_i32 = arith.constant 0 : i32
    %c0_i32_0 = arith.constant 0 : i32
    return %arg0, %c0_i32 : i32, i32
  }
  func.func @transform_1(%arg0: i32) -> (i32, i32) {
    %c0_i32 = arith.constant 0 : i32
    %c0_i32_0 = arith.constant 0 : i32
    %c0_i32_1 = arith.constant 0 : i32
    return %c0_i32, %c0_i32_0 : i32, i32
  }
  func.func @transform_2(%arg0: i32) -> (i32, i32) {
    %c0_i32 = arith.constant 0 : i32
    %c0_i32_0 = arith.constant 0 : i32
    return %arg0, %c0_i32 : i32, i32
  }
}

</mosaic_0001>

<llo_original>
// kernel: tpu_custom_call.1
$region0: #{tpu_custom_call.1}
  #allocation0 [shape = 'u32[]', space=smem, size = 0x4, offset = 0x4, fixed_abs, tag = 'smem constant byte address 0x4 - core index']
  #allocation1 [shape = 'u32[144,128]{1,0:T(1,128)}', space=vmem, size = 0x12000, scoped, tag = 'internal scratch']
  %s0 = inlined_call_operand.hbm [shape: f32[1,384], index: 0, kind: input, shape index: {}]
  %s1 = inlined_call_operand.hbm [shape: f32[384,640], index: 1, kind: input, shape index: {}]
  %s2 = inlined_call_operand.hbm [shape: f32[1,640], index: 2, kind: output, shape index: {}]
  %s3 = sld [smem:[#allocation0]]
  $region26: #{tpu_custom_call.1} parent=0
    _
  %s5 = ssub.s32 1, %s3
  %s6 = scalar_select 0, %s5, %s3
  $region1: #{tpu_custom_call.1} parent=0
    #allocation2 [shape = 'u8[1536]{0}', space=vmem, size = 0x800, scoped, tag = 'input window, operand 0, single buffered']
    #allocation3 [shape = 's32[1]{0}', space=sflag, size = 0x4, scoped, tag = 'scoped memory for tpu_custom_call.1']
    #allocation4 [shape = 's32[1]{0}', space=sflag, size = 0x4, scoped, tag = 'scoped memory for tpu_custom_call.1']
    #allocation5 [shape = 'u8[983040]{0}', space=vmem, size = 0xf0000, scoped, tag = 'input window, operand 1, single buffered']
    #allocation6 [shape = 's32[1]{0}', space=sflag, size = 0x4, scoped, tag = 'scoped memory for tpu_custom_call.1']
    #allocation7 [shape = 'u8[2560]{0}', space=vmem, size = 0xc00, scoped, tag = 'output window, operand 0, single buffered']
    %7 = vsyncpa [#allocation3], 0
    %8 = vsyncpa [#allocation6], 0
    %9 = vsyncpa [#allocation4], 0
    // Predicated region
    $region2: #{tpu_custom_call.1} parent=1 // pred_check
      _
    $region3: #{tpu_custom_call.1} parent=1 // pred_check_branch
      %11 = sbr.rel (0) target = $region5
    $region4: #{tpu_custom_call.1} parent=1 // pred_region
      %s13 = ssub.s32 48, 48
      %14 = vsyncadd [#allocation3], %s13
      %s16 = sshll.u32 [#allocation2], 4
      %s17 = int_to_ptr.vmem [resolvable:$true] %s16
      %19 = dma.hbm_to_vmem [thread:$0]  %s0, 48, %s17, [#allocation3]
    $region5: #{tpu_custom_call.1} parent=1 // pred_fallthru
      _
    // Predicated region
    $region6: #{tpu_custom_call.1} parent=1 // pred_check
      _
    $region7: #{tpu_custom_call.1} parent=1 // pred_check_branch
      %21 = sbr.rel (0) target = $region9
    $region8: #{tpu_custom_call.1} parent=1 // pred_region
      %s23 = ssub.s32 30720, 30720
      %24 = vsyncadd [#allocation6], %s23
      %s25 = sshll.u32 [#allocation5], 4
      %s26 = int_to_ptr.vmem [resolvable:$true] %s25
      %31 = dma.hbm_to_vmem [thread:$0]  %s1, 30720, %s26, [#allocation6], 640, 640, 40
    $region9: #{tpu_custom_call.1} parent=1 // pred_fallthru
      _
    // Predicated region
    $region10: #{tpu_custom_call.1} parent=1 // pred_check
      _
    $region11: #{tpu_custom_call.1} parent=1 // pred_check_branch
      %33 = sbr.rel (0) target = $region13
    $region12: #{tpu_custom_call.1} parent=1 // pred_region
      %34 = dma.done [#allocation3], 48
    $region13: #{tpu_custom_call.1} parent=1 // pred_fallthru
      _
    // Predicated region
    $region14: #{tpu_custom_call.1} parent=1 // pred_check
      _
    $region15: #{tpu_custom_call.1} parent=1 // pred_check_branch
      %36 = sbr.rel (0) target = $region17
    $region16: #{tpu_custom_call.1} parent=1 // pred_region
      %37 = dma.done [#allocation6], 30720
    $region17: #{tpu_custom_call.1} parent=1 // pred_fallthru
      _
    %v38 = vld [vmem:[#allocation2] sm:$0x7]
    %v39 = vld [vmem:[#allocation5] sm:$0xff]
    %v40 = vld [vmem:[#allocation5 + $0x8] sm:$0xff]
    %v41 = vld [vmem:[#allocation5 + $0x10] sm:$0xff]
    %v42 = vld [vmem:[#allocation5 + $0x18] sm:$0xff]
    %v43 = vld [vmem:[#allocation5 + $0x20] sm:$0xff]
    %v44 = vld [vmem:[#allocation5 + $0x28] sm:$0xff]
    %v45 = vld [vmem:[#allocation5 + $0x30] sm:$0xff]
    %v46 = vld [vmem:[#allocation5 + $0x38] sm:$0xff]
    %v47 = vld [vmem:[#allocation5 + $0x40] sm:$0xff]
    %v48 = vld [vmem:[#allocation5 + $0x48] sm:$0xff]
    %v49 = vld [vmem:[#allocation5 + $0x50] sm:$0xff]
    %v50 = vld [vmem:[#allocation5 + $0x58] sm:$0xff]
    %v51 = vld [vmem:[#allocation5 + $0x60] sm:$0xff]
    %v52 = vld [vmem:[#allocation5 + $0x68] sm:$0xff]
    %v53 = vld [vmem:[#allocation5 + $0x70] sm:$0xff]
    %v54 = vld [vmem:[#allocation5 + $0x78] sm:$0xff]
    %v55 = vld [vmem:[#allocation5 + $0x80] sm:$0xff]
    %v56 = vld [vmem:[#allocation5 + $0x88] sm:$0xff]
    %v57 = vld [vmem:[#allocation5 + $0x90] sm:$0xff]
    %v58 = vld [vmem:[#allocation5 + $0x98] sm:$0xff]
    %v59 = vld [vmem:[#allocation5 + $0xa0] sm:$0xff]
    %v60 = vld [vmem:[#allocation5 + $0xa8] sm:$0xff]
    %v61 = vld [vmem:[#allocation5 + $0xb0] sm:$0xff]
    %v62 = vld [vmem:[#allocation5 + $0xb8] sm:$0xff]
    %v63 = vld [vmem:[#allocation5 + $0xc0] sm:$0xff]
    %v64 = vld [vmem:[#allocation5 + $0xc8] sm:$0xff]
    %v65 = vld [vmem:[#allocation5 + $0xd0] sm:$0xff]
    %v66 = vld [vmem:[#allocation5 + $0xd8] sm:$0xff]
    %v67 = vld [vmem:[#allocation5 + $0xe0] sm:$0xff]
    %v68 = vld [vmem:[#allocation5 + $0xe8] sm:$0xff]
    %v69 = vld [vmem:[#allocation5 + $0xf0] sm:$0xff]
    %v70 = vld [vmem:[#allocation5 + $0xf8] sm:$0xff]
    %v71 = vld [vmem:[#allocation5 + $0x100] sm:$0xff]
    %v72 = vld [vmem:[#allocation5 + $0x108] sm:$0xff]
    %v73 = vld [vmem:[#allocation5 + $0x110] sm:$0xff]
    %v74 = vld [vmem:[#allocation5 + $0x118] sm:$0xff]
    %v75 = vld [vmem:[#allocation5 + $0x120] sm:$0xff]
    %v76 = vld [vmem:[#allocation5 + $0x128] sm:$0xff]
    %v77 = vld [vmem:[#allocation5 + $0x130] sm:$0xff]
    %v78 = vld [vmem:[#allocation5 + $0x138] sm:$0xff]
    %v79 = vld [vmem:[#allocation5 + $0x140] sm:$0xff]
    %v80 = vld [vmem:[#allocation5 + $0x148] sm:$0xff]
    %v81 = vld [vmem:[#allocation5 + $0x150] sm:$0xff]
    %v82 = vld [vmem:[#allocation5 + $0x158] sm:$0xff]
    %v83 = vld [vmem:[#allocation5 + $0x160] sm:$0xff]
    %v84 = vld [vmem:[#allocation5 + $0x168] sm:$0xff]
    %v85 = vld [vmem:[#allocation5 + $0x170] sm:$0xff]
    %v86 = vld [vmem:[#allocation5 + $0x178] sm:$0xff]
    %v87 = vld [vmem:[#allocation5 + $0x180] sm:$0xff]
    %v88 = vld [vmem:[#allocation5 + $0x188] sm:$0xff]
    %v89 = vld [vmem:[#allocation5 + $0x190] sm:$0xff]
    %v90 = vld [vmem:[#allocation5 + $0x198] sm:$0xff]
    %v91 = vld [vmem:[#allocation5 + $0x1a0] sm:$0xff]
    %v92 = vld [vmem:[#allocation5 + $0x1a8] sm:$0xff]
    %v93 = vld [vmem:[#allocation5 + $0x1b0] sm:$0xff]
    %v94 = vld [vmem:[#allocation5 + $0x1b8] sm:$0xff]
    %v95 = vld [vmem:[#allocation5 + $0x1c0] sm:$0xff]
    %v96 = vld [vmem:[#allocation5 + $0x1c8] sm:$0xff]
    %v97 = vld [vmem:[#allocation5 + $0x1d0] sm:$0xff]
    %v98 = vld [vmem:[#allocation5 + $0x1d8] sm:$0xff]
    %v99 = vld [vmem:[#allocation5 + $0x1e0] sm:$0xff]
    %v100 = vld [vmem:[#allocation5 + $0x1e8] sm:$0xff]
    %v101 = vld [vmem:[#allocation5 + $0x1f0] sm:$0xff]
    %v102 = vld [vmem:[#allocation5 + $0x1f8] sm:$0xff]
    %v103 = vld [vmem:[#allocation5 + $0x200] sm:$0xff]
    %v104 = vld [vmem:[#allocation5 + $0x208] sm:$0xff]
    %v105 = vld [vmem:[#allocation5 + $0x210] sm:$0xff]
    %v106 = vld [vmem:[#allocation5 + $0x218] sm:$0xff]
    %v107 = vld [vmem:[#allocation5 + $0x220] sm:$0xff]
    %v108 = vld [vmem:[#allocation5 + $0x228] sm:$0xff]
    %v109 = vld [vmem:[#allocation5 + $0x230] sm:$0xff]
    %v110 = vld [vmem:[#allocation5 + $0x238] sm:$0xff]
    %v111 = vld [vmem:[#allocation5 + $0x240] sm:$0xff]
    %v112 = vld [vmem:[#allocation5 + $0x248] sm:$0xff]
    %v113 = vld [vmem:[#allocation5 + $0x250] sm:$0xff]
    %v114 = vld [vmem:[#allocation5 + $0x258] sm:$0xff]
    %v115 = vld [vmem:[#allocation5 + $0x260] sm:$0xff]
    %v116 = vld [vmem:[#allocation5 + $0x268] sm:$0xff]
    %v117 = vld [vmem:[#allocation5 + $0x270] sm:$0xff]
    %v118 = vld [vmem:[#allocation5 + $0x278] sm:$0xff]
    %v119 = vld [vmem:[#allocation5 + $0x280] sm:$0xff]
    %v120 = vld [vmem:[#allocation5 + $0x288] sm:$0xff]
    %v121 = vld [vmem:[#allocation5 + $0x290] sm:$0xff]
    %v122 = vld [vmem:[#allocation5 + $0x298] sm:$0xff]
    %v123 = vld [vmem:[#allocation5 + $0x2a0] sm:$0xff]
    %v124 = vld [vmem:[#allocation5 + $0x2a8] sm:$0xff]
    %v125 = vld [vmem:[#allocation5 + $0x2b0] sm:$0xff]
    %v126 = vld [vmem:[#allocation5 + $0x2b8] sm:$0xff]
    %v127 = vld [vmem:[#allocation5 + $0x2c0] sm:$0xff]
    %v128 = vld [vmem:[#allocation5 + $0x2c8] sm:$0xff]
    %v129 = vld [vmem:[#allocation5 + $0x2d0] sm:$0xff]
    %v130 = vld [vmem:[#allocation5 + $0x2d8] sm:$0xff]
    %v131 = vld [vmem:[#allocation5 + $0x2e0] sm:$0xff]
    %v132 = vld [vmem:[#allocation5 + $0x2e8] sm:$0xff]
    %v133 = vld [vmem:[#allocation5 + $0x2f0] sm:$0xff]
    %v134 = vld [vmem:[#allocation5 + $0x2f8] sm:$0xff]
    %v135 = vld [vmem:[#allocation5 + $0x300] sm:$0xff]
    %v136 = vld [vmem:[#allocation5 + $0x308] sm:$0xff]
    %v137 = vld [vmem:[#allocation5 + $0x310] sm:$0xff]
    %v138 = vld [vmem:[#allocation5 + $0x318] sm:$0xff]
    %v139 = vld [vmem:[#allocation5 + $0x320] sm:$0xff]
    %v140 = vld [vmem:[#allocation5 + $0x328] sm:$0xff]
    %v141 = vld [vmem:[#allocation5 + $0x330] sm:$0xff]
    %v142 = vld [vmem:[#allocation5 + $0x338] sm:$0xff]
    %v143 = vld [vmem:[#allocation5 + $0x340] sm:$0xff]
    %v144 = vld [vmem:[#allocation5 + $0x348] sm:$0xff]
    %v145 = vld [vmem:[#allocation5 + $0x350] sm:$0xff]
    %v146 = vld [vmem:[#allocation5 + $0x358] sm:$0xff]
    %v147 = vld [vmem:[#allocation5 + $0x360] sm:$0xff]
    %v148 = vld [vmem:[#allocation5 + $0x368] sm:$0xff]
    %v149 = vld [vmem:[#allocation5 + $0x370] sm:$0xff]
    %v150 = vld [vmem:[#allocation5 + $0x378] sm:$0xff]
    %v151 = vld [vmem:[#allocation5 + $0x380] sm:$0xff]
    %v152 = vld [vmem:[#allocation5 + $0x388] sm:$0xff]
    %v153 = vld [vmem:[#allocation5 + $0x390] sm:$0xff]
    %v154 = vld [vmem:[#allocation5 + $0x398] sm:$0xff]
    %v155 = vld [vmem:[#allocation5 + $0x3a0] sm:$0xff]
    %v156 = vld [vmem:[#allocation5 + $0x3a8] sm:$0xff]
    %v157 = vld [vmem:[#allocation5 + $0x3b0] sm:$0xff]
    %v158 = vld [vmem:[#allocation5 + $0x3b8] sm:$0xff]
    %v159 = vld [vmem:[#allocation5 + $0x3c0] sm:$0xff]
    %v160 = vld [vmem:[#allocation5 + $0x3c8] sm:$0xff]
    %v161 = vld [vmem:[#allocation5 + $0x3d0] sm:$0xff]
    %v162 = vld [vmem:[#allocation5 + $0x3d8] sm:$0xff]
    %v163 = vld [vmem:[#allocation5 + $0x3e0] sm:$0xff]
    %v164 = vld [vmem:[#allocation5 + $0x3e8] sm:$0xff]
    %v165 = vld [vmem:[#allocation5 + $0x3f0] sm:$0xff]
    %v166 = vld [vmem:[#allocation5 + $0x3f8] sm:$0xff]
    %v167 = vld [vmem:[#allocation5 + $0x400] sm:$0xff]
    %v168 = vld [vmem:[#allocation5 + $0x408] sm:$0xff]
    %v169 = vld [vmem:[#allocation5 + $0x410] sm:$0xff]
    %v170 = vld [vmem:[#allocation5 + $0x418] sm:$0xff]
    %v171 = vld [vmem:[#allocation5 + $0x420] sm:$0xff]
    %v172 = vld [vmem:[#allocation5 + $0x428] sm:$0xff]
    %v173 = vld [vmem:[#allocation5 + $0x430] sm:$0xff]
    %v174 = vld [vmem:[#allocation5 + $0x438] sm:$0xff]
    %v175 = vld [vmem:[#allocation5 + $0x440] sm:$0xff]
    %v176 = vld [vmem:[#allocation5 + $0x448] sm:$0xff]
    %v177 = vld [vmem:[#allocation5 + $0x450] sm:$0xff]
    %v178 = vld [vmem:[#allocation5 + $0x458] sm:$0xff]
    %v179 = vld [vmem:[#allocation5 + $0x460] sm:$0xff]
    %v180 = vld [vmem:[#allocation5 + $0x468] sm:$0xff]
    %v181 = vld [vmem:[#allocation5 + $0x470] sm:$0xff]
    %v182 = vld [vmem:[#allocation5 + $0x478] sm:$0xff]
    %v183 = vld [vmem:[#allocation5 + $0x480] sm:$0xff]
    %v184 = vld [vmem:[#allocation5 + $0x488] sm:$0xff]
    %v185 = vld [vmem:[#allocation5 + $0x490] sm:$0xff]
    %v186 = vld [vmem:[#allocation5 + $0x498] sm:$0xff]
    %v187 = vld [vmem:[#allocation5 + $0x4a0] sm:$0xff]
    %v188 = vld [vmem:[#allocation5 + $0x4a8] sm:$0xff]
    %v189 = vld [vmem:[#allocation5 + $0x4b0] sm:$0xff]
    %v190 = vld [vmem:[#allocation5 + $0x4b8] sm:$0xff]
    %v191 = vld [vmem:[#allocation5 + $0x4c0] sm:$0xff]
    %v192 = vld [vmem:[#allocation5 + $0x4c8] sm:$0xff]
    %v193 = vld [vmem:[#allocation5 + $0x4d0] sm:$0xff]
    %v194 = vld [vmem:[#allocation5 + $0x4d8] sm:$0xff]
    %v195 = vld [vmem:[#allocation5 + $0x4e0] sm:$0xff]
    %v196 = vld [vmem:[#allocation5 + $0x4e8] sm:$0xff]
    %v197 = vld [vmem:[#allocation5 + $0x4f0] sm:$0xff]
    %v198 = vld [vmem:[#allocation5 + $0x4f8] sm:$0xff]
    %v199 = vld [vmem:[#allocation5 + $0x500] sm:$0xff]
    %v200 = vld [vmem:[#allocation5 + $0x508] sm:$0xff]
    %v201 = vld [vmem:[#allocation5 + $0x510] sm:$0xff]
    %v202 = vld [vmem:[#allocation5 + $0x518] sm:$0xff]
    %v203 = vld [vmem:[#allocation5 + $0x520] sm:$0xff]
    %v204 = vld [vmem:[#allocation5 + $0x528] sm:$0xff]
    %v205 = vld [vmem:[#allocation5 + $0x530] sm:$0xff]
    %v206 = vld [vmem:[#allocation5 + $0x538] sm:$0xff]
    %v207 = vld [vmem:[#allocation5 + $0x540] sm:$0xff]
    %v208 = vld [vmem:[#allocation5 + $0x548] sm:$0xff]
    %v209 = vld [vmem:[#allocation5 + $0x550] sm:$0xff]
    %v210 = vld [vmem:[#allocation5 + $0x558] sm:$0xff]
    %v211 = vld [vmem:[#allocation5 + $0x560] sm:$0xff]
    %v212 = vld [vmem:[#allocation5 + $0x568] sm:$0xff]
    %v213 = vld [vmem:[#allocation5 + $0x570] sm:$0xff]
    %v214 = vld [vmem:[#allocation5 + $0x578] sm:$0xff]
    %v215 = vld [vmem:[#allocation5 + $0x580] sm:$0xff]
    %v216 = vld [vmem:[#allocation5 + $0x588] sm:$0xff]
    %v217 = vld [vmem:[#allocation5 + $0x590] sm:$0xff]
    %v218 = vld [vmem:[#allocation5 + $0x598] sm:$0xff]
    %v219 = vld [vmem:[#allocation5 + $0x5a0] sm:$0xff]
    %v220 = vld [vmem:[#allocation5 + $0x5a8] sm:$0xff]
    %v221 = vld [vmem:[#allocation5 + $0x5b0] sm:$0xff]
    %v222 = vld [vmem:[#allocation5 + $0x5b8] sm:$0xff]
    %v223 = vld [vmem:[#allocation5 + $0x5c0] sm:$0xff]
    %v224 = vld [vmem:[#allocation5 + $0x5c8] sm:$0xff]
    %v225 = vld [vmem:[#allocation5 + $0x5d0] sm:$0xff]
    %v226 = vld [vmem:[#allocation5 + $0x5d8] sm:$0xff]
    %v227 = vld [vmem:[#allocation5 + $0x5e0] sm:$0xff]
    %v228 = vld [vmem:[#allocation5 + $0x5e8] sm:$0xff]
    %v229 = vld [vmem:[#allocation5 + $0x5f0] sm:$0xff]
    %v230 = vld [vmem:[#allocation5 + $0x5f8] sm:$0xff]
    %v231 = vld [vmem:[#allocation5 + $0x600] sm:$0xff]
    %v232 = vld [vmem:[#allocation5 + $0x608] sm:$0xff]
    %v233 = vld [vmem:[#allocation5 + $0x610] sm:$0xff]
    %v234 = vld [vmem:[#allocation5 + $0x618] sm:$0xff]
    %v235 = vld [vmem:[#allocation5 + $0x620] sm:$0xff]
    %v236 = vld [vmem:[#allocation5 + $0x628] sm:$0xff]
    %v237 = vld [vmem:[#allocation5 + $0x630] sm:$0xff]
    %v238 = vld [vmem:[#allocation5 + $0x638] sm:$0xff]
    %v239 = vld [vmem:[#allocation5 + $0x640] sm:$0xff]
    %v240 = vld [vmem:[#allocation5 + $0x648] sm:$0xff]
    %v241 = vld [vmem:[#allocation5 + $0x650] sm:$0xff]
    %v242 = vld [vmem:[#allocation5 + $0x658] sm:$0xff]
    %v243 = vld [vmem:[#allocation5 + $0x660] sm:$0xff]
    %v244 = vld [vmem:[#allocation5 + $0x668] sm:$0xff]
    %v245 = vld [vmem:[#allocation5 + $0x670] sm:$0xff]
    %v246 = vld [vmem:[#allocation5 + $0x678] sm:$0xff]
    %v247 = vld [vmem:[#allocation5 + $0x680] sm:$0xff]
    %v248 = vld [vmem:[#allocation5 + $0x688] sm:$0xff]
    %v249 = vld [vmem:[#allocation5 + $0x690] sm:$0xff]
    %v250 = vld [vmem:[#allocation5 + $0x698] sm:$0xff]
    %v251 = vld [vmem:[#allocation5 + $0x6a0] sm:$0xff]
    %v252 = vld [vmem:[#allocation5 + $0x6a8] sm:$0xff]
    %v253 = vld [vmem:[#allocation5 + $0x6b0] sm:$0xff]
    %v254 = vld [vmem:[#allocation5 + $0x6b8] sm:$0xff]
    %v255 = vld [vmem:[#allocation5 + $0x6c0] sm:$0xff]
    %v256 = vld [vmem:[#allocation5 + $0x6c8] sm:$0xff]
    %v257 = vld [vmem:[#allocation5 + $0x6d0] sm:$0xff]
    %v258 = vld [vmem:[#allocation5 + $0x6d8] sm:$0xff]
    %v259 = vld [vmem:[#allocation5 + $0x6e0] sm:$0xff]
    %v260 = vld [vmem:[#allocation5 + $0x6e8] sm:$0xff]
    %v261 = vld [vmem:[#allocation5 + $0x6f0] sm:$0xff]
    %v262 = vld [vmem:[#allocation5 + $0x6f8] sm:$0xff]
    %v263 = vld [vmem:[#allocation5 + $0x700] sm:$0xff]
    %v264 = vld [vmem:[#allocation5 + $0x708] sm:$0xff]
    %v265 = vld [vmem:[#allocation5 + $0x710] sm:$0xff]
    %v266 = vld [vmem:[#allocation5 + $0x718] sm:$0xff]
    %v267 = vld [vmem:[#allocation5 + $0x720] sm:$0xff]
    %v268 = vld [vmem:[#allocation5 + $0x728] sm:$0xff]
    %v269 = vld [vmem:[#allocation5 + $0x730] sm:$0xff]
    %v270 = vld [vmem:[#allocation5 + $0x738] sm:$0xff]
    %v271 = vld [vmem:[#allocation5 + $0x740] sm:$0xff]
    %v272 = vld [vmem:[#allocation5 + $0x748] sm:$0xff]
    %v273 = vld [vmem:[#allocation5 + $0x750] sm:$0xff]
    %v274 = vld [vmem:[#allocation5 + $0x758] sm:$0xff]
    %v275 = vld [vmem:[#allocation5 + $0x760] sm:$0xff]
    %v276 = vld [vmem:[#allocation5 + $0x768] sm:$0xff]
    %v277 = vld [vmem:[#allocation5 + $0x770] sm:$0xff]
    %v278 = vld [vmem:[#allocation5 + $0x778] sm:$0xff]
    %v280 = vlaneseq
    %v281 = vshrl.u32 %v280, 7
    %v282 = vsub.s32 0, %v281
    %v283 = vrot.slane %v38, %v282
    %v284 = vlaneseq
    %v285 = vshrl.u32 %v284, 7
    %v286 = vsub.s32 1, %v285
    %v287 = vrot.slane %v38, %v286
    %v288 = vlaneseq
    %v289 = vshrl.u32 %v288, 7
    %v290 = vsub.s32 2, %v289
    %v291 = vrot.slane %v38, %v290
    %295 = vmatprep.subr.mxu0 %v40
    %296 = vmatpush1.msra.mxu0 %v39
    %297 = vmatprep.subr.mxu0 %v45
    %298 = vmatpush1.msra.mxu0 %v44
    %299 = vmatprep.subr.mxu0 %v50
    %300 = vmatpush1.msra.mxu0 %v49
    %301 = vmatprep.subr.mxu0 %v55
    %302 = vmatpush1.msra.mxu0 %v54
    %303 = vmatprep.subr.mxu0 %v60
    %304 = vmatpush1.msra.mxu0 %v59
    %305 = vmatprep.subr.mxu0 %v65
    %306 = vmatpush1.msra.mxu0 %v64
    %307 = vmatprep.subr.mxu0 %v70
    %308 = vmatpush1.msra.mxu0 %v69
    %309 = vmatprep.subr.mxu0 %v75
    %310 = vmatpush1.msra.mxu0 %v74
    %311 = vmatprep.subr.mxu0 %v80
    %312 = vmatpush1.msra.mxu0 %v79
    %313 = vmatprep.subr.mxu0 %v85
    %314 = vmatpush1.msra.mxu0 %v84
    %315 = vmatprep.subr.mxu0 %v90
    %316 = vmatpush1.msra.mxu0 %v89
    %317 = vmatprep.subr.mxu0 %v95
    %318 = vmatpush1.msra.mxu0 %v94
    %319 = vmatprep.subr.mxu0 %v100
    %320 = vmatpush1.msra.mxu0 %v99
    %321 = vmatprep.subr.mxu0 %v105
    %322 = vmatpush1.msra.mxu0 %v104
    %323 = vmatprep.subr.mxu0 %v110
    %324 = vmatpush1.msra.mxu0 %v109
    %325 = vmatprep.subr.mxu0 %v115
    %326 = vmatpush1.msra.mxu0 %v114
    %327 = vmatprep.subr.mxu0 %v120
    %328 = vmatpush1.msra.mxu0 %v119
    %329 = vmatprep.subr.mxu0 %v125
    %330 = vmatpush1.msra.mxu0 %v124
    %331 = vmatprep.subr.mxu0 %v130
    %332 = vmatpush1.msra.mxu0 %v129
    %333 = vmatprep.subr.mxu0 %v135
    %334 = vmatpush1.msra.mxu0 %v134
    %335 = vmatprep.subr.mxu0 %v140
    %336 = vmatpush1.msra.mxu0 %v139
    %337 = vmatprep.subr.mxu0 %v145
    %338 = vmatpush1.msra.mxu0 %v144
    %339 = vmatprep.subr.mxu0 %v150
    %340 = vmatpush1.msra.mxu0 %v149
    %341 = vmatprep.subr.mxu0 %v155
    %342 = vmatpush1.msra.mxu0 %v154
    %343 = vmatprep.subr.mxu0 %v160
    %344 = vmatpush1.msra.mxu0 %v159
    %345 = vmatprep.subr.mxu0 %v165
    %346 = vmatpush1.msra.mxu0 %v164
    %347 = vmatprep.subr.mxu0 %v170
    %348 = vmatpush1.msra.mxu0 %v169
    %349 = vmatprep.subr.mxu0 %v175
    %350 = vmatpush1.msra.mxu0 %v174
    %351 = vmatprep.subr.mxu0 %v180
    %352 = vmatpush1.msra.mxu0 %v179
    %353 = vmatprep.subr.mxu0 %v185
    %354 = vmatpush1.msra.mxu0 %v184
    %355 = vmatprep.subr.mxu0 %v190
    %356 = vmatpush1.msra.mxu0 %v189
    %357 = vmatprep.subr.mxu0 %v195
    %358 = vmatpush1.msra.mxu0 %v194
    %359 = vmatprep.mubr.f32.mxu0 %v287
    %360 = vmatmul.mubr.f32.gmra.mrb[0].mxu0 %v283
    %v361 = vpop.f32.mrb[0].mxu0
    %v362 = vadd.f32 0.0, %v361
    %v363 = vpop.f32.mrb[0].mxu0
    %v364 = vadd.f32 0.0, %v363
    %365 = vdwg.mxu0
    %366 = vmatprep.subr.mxu0 %v200
    %367 = vmatpush1.msra.mxu0 %v199
    %368 = vmatprep.subr.mxu0 %v205
    %369 = vmatpush1.msra.mxu0 %v204
    %370 = vmatprep.subr.mxu0 %v210
    %371 = vmatpush1.msra.mxu0 %v209
    %372 = vmatprep.subr.mxu0 %v215
    %373 = vmatpush1.msra.mxu0 %v214
    %374 = vmatprep.subr.mxu0 %v220
    %375 = vmatpush1.msra.mxu0 %v219
    %376 = vmatprep.subr.mxu0 %v225
    %377 = vmatpush1.msra.mxu0 %v224
    %378 = vmatprep.subr.mxu0 %v230
    %379 = vmatpush1.msra.mxu0 %v229
    %380 = vmatprep.subr.mxu0 %v235
    %381 = vmatpush1.msra.mxu0 %v234
    %382 = vmatprep.subr.mxu0 %v240
    %383 = vmatpush1.msra.mxu0 %v239
    %384 = vmatprep.subr.mxu0 %v245
    %385 = vmatpush1.msra.mxu0 %v244
    %386 = vmatprep.subr.mxu0 %v250
    %387 = vmatpush1.msra.mxu0 %v249
    %388 = vmatprep.subr.mxu0 %v255
    %389 = vmatpush1.msra.mxu0 %v254
    %390 = vmatprep.subr.mxu0 %v260
    %391 = vmatpush1.msra.mxu0 %v259
    %392 = vmatprep.subr.mxu0 %v265
    %393 = vmatpush1.msra.mxu0 %v264
    %394 = vmatprep.subr.mxu0 %v270
    %395 = vmatpush1.msra.mxu0 %v269
    %396 = vmatprep.subr.mxu0 %v275
    %397 = vmatpush1.msra.mxu0 %v274
    %398 = vmatprep.subr.mxu0 0.0
    %399 = vmatpush1.msra.mxu0 0.0
    %400 = vmatprep.subr.mxu0 0.0
    %401 = vmatpush1.msra.mxu0 0.0
    %402 = vmatprep.subr.mxu0 0.0
    %403 = vmatpush1.msra.mxu0 0.0
    %404 = vmatprep.subr.mxu0 0.0
    %405 = vmatpush1.msra.mxu0 0.0
    %406 = vmatprep.subr.mxu0 0.0
    %407 = vmatpush1.msra.mxu0 0.0
    %408 = vmatprep.subr.mxu0 0.0
    %409 = vmatpush1.msra.mxu0 0.0
    %410 = vmatprep.subr.mxu0 0.0
    %411 = vmatpush1.msra.mxu0 0.0
    %412 = vmatprep.subr.mxu0 0.0
    %413 = vmatpush1.msra.mxu0 0.0
    %414 = vmatprep.subr.mxu0 0.0
    %415 = vmatpush1.msra.mxu0 0.0
    %416 = vmatprep.subr.mxu0 0.0
    %417 = vmatpush1.msra.mxu0 0.0
    %418 = vmatprep.subr.mxu0 0.0
    %419 = vmatpush1.msra.mxu0 0.0
    %420 = vmatprep.subr.mxu0 0.0
    %421 = vmatpush1.msra.mxu0 0.0
    %422 = vmatprep.subr.mxu0 0.0
    %423 = vmatpush1.msra.mxu0 0.0
    %424 = vmatprep.subr.mxu0 0.0
    %425 = vmatpush1.msra.mxu0 0.0
    %426 = vmatprep.subr.mxu0 0.0
    %427 = vmatpush1.msra.mxu0 0.0
    %428 = vmatprep.subr.mxu0 0.0
    %429 = vmatpush1.msra.mxu0 0.0
    %430 = vmatprep.mubr.f32.mxu0 0.0
    %431 = vmatmul.mubr.f32.gmra.mrb[0].mxu0 %v291
    %v432 = vpop.f32.mrb[0].mxu0
    %v433 = vadd.f32 %v362, %v432
    %v434 = vpop.f32.mrb[0].mxu0
    %v435 = vadd.f32 %v364, %v434
    %436 = vdwg.mxu0
    %437 = vmatprep.subr.mxu0 %v42
    %438 = vmatpush1.msra.mxu0 %v41
    %439 = vmatprep.subr.mxu0 %v47
    %440 = vmatpush1.msra.mxu0 %v46
    %441 = vmatprep.subr.mxu0 %v52
    %442 = vmatpush1.msra.mxu0 %v51
    %443 = vmatprep.subr.mxu0 %v57
    %444 = vmatpush1.msra.mxu0 %v56
    %445 = vmatprep.subr.mxu0 %v62
    %446 = vmatpush1.msra.mxu0 %v61
    %447 = vmatprep.subr.mxu0 %v67
    %448 = vmatpush1.msra.mxu0 %v66
    %449 = vmatprep.subr.mxu0 %v72
    %450 = vmatpush1.msra.mxu0 %v71
    %451 = vmatprep.subr.mxu0 %v77
    %452 = vmatpush1.msra.mxu0 %v76
    %453 = vmatprep.subr.mxu0 %v82
    %454 = vmatpush1.msra.mxu0 %v81
    %455 = vmatprep.subr.mxu0 %v87
    %456 = vmatpush1.msra.mxu0 %v86
    %457 = vmatprep.subr.mxu0 %v92
    %458 = vmatpush1.msra.mxu0 %v91
    %459 = vmatprep.subr.mxu0 %v97
    %460 = vmatpush1.msra.mxu0 %v96
    %461 = vmatprep.subr.mxu0 %v102
    %462 = vmatpush1.msra.mxu0 %v101
    %463 = vmatprep.subr.mxu0 %v107
    %464 = vmatpush1.msra.mxu0 %v106
    %465 = vmatprep.subr.mxu0 %v112
    %466 = vmatpush1.msra.mxu0 %v111
    %467 = vmatprep.subr.mxu0 %v117
    %468 = vmatpush1.msra.mxu0 %v116
    %469 = vmatprep.subr.mxu0 %v122
    %470 = vmatpush1.msra.mxu0 %v121
    %471 = vmatprep.subr.mxu0 %v127
    %472 = vmatpush1.msra.mxu0 %v126
    %473 = vmatprep.subr.mxu0 %v132
    %474 = vmatpush1.msra.mxu0 %v131
    %475 = vmatprep.subr.mxu0 %v137
    %476 = vmatpush1.msra.mxu0 %v136
    %477 = vmatprep.subr.mxu0 %v142
    %478 = vmatpush1.msra.mxu0 %v141
    %479 = vmatprep.subr.mxu0 %v147
    %480 = vmatpush1.msra.mxu0 %v146
    %481 = vmatprep.subr.mxu0 %v152
    %482 = vmatpush1.msra.mxu0 %v151
    %483 = vmatprep.subr.mxu0 %v157
    %484 = vmatpush1.msra.mxu0 %v156
    %485 = vmatprep.subr.mxu0 %v162
    %486 = vmatpush1.msra.mxu0 %v161
    %487 = vmatprep.subr.mxu0 %v167
    %488 = vmatpush1.msra.mxu0 %v166
    %489 = vmatprep.subr.mxu0 %v172
    %490 = vmatpush1.msra.mxu0 %v171
    %491 = vmatprep.subr.mxu0 %v177
    %492 = vmatpush1.msra.mxu0 %v176
    %493 = vmatprep.subr.mxu0 %v182
    %494 = vmatpush1.msra.mxu0 %v181
    %495 = vmatprep.subr.mxu0 %v187
    %496 = vmatpush1.msra.mxu0 %v186
    %497 = vmatprep.subr.mxu0 %v192
    %498 = vmatpush1.msra.mxu0 %v191
    %499 = vmatprep.subr.mxu0 %v197
    %500 = vmatpush1.msra.mxu0 %v196
    %501 = vmatprep.mubr.f32.mxu0 %v287
    %502 = vmatmul.mubr.f32.gmra.mrb[0].mxu0 %v283
    %v503 = vpop.f32.mrb[0].mxu0
    %v504 = vadd.f32 0.0, %v503
    %v505 = vpop.f32.mrb[0].mxu0
    %v506 = vadd.f32 0.0, %v505
    %507 = vdwg.mxu0
    %508 = vmatprep.subr.mxu0 %v202
    %509 = vmatpush1.msra.mxu0 %v201
    %510 = vmatprep.subr.mxu0 %v207
    %511 = vmatpush1.msra.mxu0 %v206
    %512 = vmatprep.subr.mxu0 %v212
    %513 = vmatpush1.msra.mxu0 %v211
    %514 = vmatprep.subr.mxu0 %v217
    %515 = vmatpush1.msra.mxu0 %v216
    %516 = vmatprep.subr.mxu0 %v222
    %517 = vmatpush1.msra.mxu0 %v221
    %518 = vmatprep.subr.mxu0 %v227
    %519 = vmatpush1.msra.mxu0 %v226
    %520 = vmatprep.subr.mxu0 %v232
    %521 = vmatpush1.msra.mxu0 %v231
    %522 = vmatprep.subr.mxu0 %v237
    %523 = vmatpush1.msra.mxu0 %v236
    %524 = vmatprep.subr.mxu0 %v242
    %525 = vmatpush1.msra.mxu0 %v241
    %526 = vmatprep.subr.mxu0 %v247
    %527 = vmatpush1.msra.mxu0 %v246
    %528 = vmatprep.subr.mxu0 %v252
    %529 = vmatpush1.msra.mxu0 %v251
    %530 = vmatprep.subr.mxu0 %v257
    %531 = vmatpush1.msra.mxu0 %v256
    %532 = vmatprep.subr.mxu0 %v262
    %533 = vmatpush1.msra.mxu0 %v261
    %534 = vmatprep.subr.mxu0 %v267
    %535 = vmatpush1.msra.mxu0 %v266
    %536 = vmatprep.subr.mxu0 %v272
    %537 = vmatpush1.msra.mxu0 %v271
    %538 = vmatprep.subr.mxu0 %v277
    %539 = vmatpush1.msra.mxu0 %v276
    %540 = vmatprep.subr.mxu0 0.0
    %541 = vmatpush1.msra.mxu0 0.0
    %542 = vmatprep.subr.mxu0 0.0
    %543 = vmatpush1.msra.mxu0 0.0
    %544 = vmatprep.subr.mxu0 0.0
    %545 = vmatpush1.msra.mxu0 0.0
    %546 = vmatprep.subr.mxu0 0.0
    %547 = vmatpush1.msra.mxu0 0.0
    %548 = vmatprep.subr.mxu0 0.0
    %549 = vmatpush1.msra.mxu0 0.0
    %550 = vmatprep.subr.mxu0 0.0
    %551 = vmatpush1.msra.mxu0 0.0
    %552 = vmatprep.subr.mxu0 0.0
    %553 = vmatpush1.msra.mxu0 0.0
    %554 = vmatprep.subr.mxu0 0.0
    %555 = vmatpush1.msra.mxu0 0.0
    %556 = vmatprep.subr.mxu0 0.0
    %557 = vmatpush1.msra.mxu0 0.0
    %558 = vmatprep.subr.mxu0 0.0
    %559 = vmatpush1.msra.mxu0 0.0
    %560 = vmatprep.subr.mxu0 0.0
    %561 = vmatpush1.msra.mxu0 0.0
    %562 = vmatprep.subr.mxu0 0.0
    %563 = vmatpush1.msra.mxu0 0.0
    %564 = vmatprep.subr.mxu0 0.0
    %565 = vmatpush1.msra.mxu0 0.0
    %566 = vmatprep.subr.mxu0 0.0
    %567 = vmatpush1.msra.mxu0 0.0
    %568 = vmatprep.subr.mxu0 0.0
    %569 = vmatpush1.msra.mxu0 0.0
    %570 = vmatprep.subr.mxu0 0.0
    %571 = vmatpush1.msra.mxu0 0.0
    %572 = vmatprep.mubr.f32.mxu0 0.0
    %573 = vmatmul.mubr.f32.gmra.mrb[0].mxu0 %v291
    %v574 = vpop.f32.mrb[0].mxu0
    %v575 = vadd.f32 %v504, %v574
    %v576 = vpop.f32.mrb[0].mxu0
    %v577 = vadd.f32 %v506, %v576
    %578 = vdwg.mxu0
    %579 = vmatprep.subr.mxu0 0.0
    %580 = vmatpush1.msra.mxu0 %v43
    %581 = vmatprep.subr.mxu0 0.0
    %582 = vmatpush1.msra.mxu0 %v48
    %583 = vmatprep.subr.mxu0 0.0
    %584 = vmatpush1.msra.mxu0 %v53
    %585 = vmatprep.subr.mxu0 0.0
    %586 = vmatpush1.msra.mxu0 %v58
    %587 = vmatprep.subr.mxu0 0.0
    %588 = vmatpush1.msra.mxu0 %v63
    %589 = vmatprep.subr.mxu0 0.0
    %590 = vmatpush1.msra.mxu0 %v68
    %591 = vmatprep.subr.mxu0 0.0
    %592 = vmatpush1.msra.mxu0 %v73
    %593 = vmatprep.subr.mxu0 0.0
    %594 = vmatpush1.msra.mxu0 %v78
    %595 = vmatprep.subr.mxu0 0.0
    %596 = vmatpush1.msra.mxu0 %v83
    %597 = vmatprep.subr.mxu0 0.0
    %598 = vmatpush1.msra.mxu0 %v88
    %599 = vmatprep.subr.mxu0 0.0
    %600 = vmatpush1.msra.mxu0 %v93
    %601 = vmatprep.subr.mxu0 0.0
    %602 = vmatpush1.msra.mxu0 %v98
    %603 = vmatprep.subr.mxu0 0.0
    %604 = vmatpush1.msra.mxu0 %v103
    %605 = vmatprep.subr.mxu0 0.0
    %606 = vmatpush1.msra.mxu0 %v108
    %607 = vmatprep.subr.mxu0 0.0
    %608 = vmatpush1.msra.mxu0 %v113
    %609 = vmatprep.subr.mxu0 0.0
    %610 = vmatpush1.msra.mxu0 %v118
    %611 = vmatprep.subr.mxu0 0.0
    %612 = vmatpush1.msra.mxu0 %v123
    %613 = vmatprep.subr.mxu0 0.0
    %614 = vmatpush1.msra.mxu0 %v128
    %615 = vmatprep.subr.mxu0 0.0
    %616 = vmatpush1.msra.mxu0 %v133
    %617 = vmatprep.subr.mxu0 0.0
    %618 = vmatpush1.msra.mxu0 %v138
    %619 = vmatprep.subr.mxu0 0.0
    %620 = vmatpush1.msra.mxu0 %v143
    %621 = vmatprep.subr.mxu0 0.0
    %622 = vmatpush1.msra.mxu0 %v148
    %623 = vmatprep.subr.mxu0 0.0
    %624 = vmatpush1.msra.mxu0 %v153
    %625 = vmatprep.subr.mxu0 0.0
    %626 = vmatpush1.msra.mxu0 %v158
    %627 = vmatprep.subr.mxu0 0.0
    %628 = vmatpush1.msra.mxu0 %v163
    %629 = vmatprep.subr.mxu0 0.0
    %630 = vmatpush1.msra.mxu0 %v168
    %631 = vmatprep.subr.mxu0 0.0
    %632 = vmatpush1.msra.mxu0 %v173
    %633 = vmatprep.subr.mxu0 0.0
    %634 = vmatpush1.msra.mxu0 %v178
    %635 = vmatprep.subr.mxu0 0.0
    %636 = vmatpush1.msra.mxu0 %v183
    %637 = vmatprep.subr.mxu0 0.0
    %638 = vmatpush1.msra.mxu0 %v188
    %639 = vmatprep.subr.mxu0 0.0
    %640 = vmatpush1.msra.mxu0 %v193
    %641 = vmatprep.subr.mxu0 0.0
    %642 = vmatpush1.msra.mxu0 %v198
    %643 = vmatprep.mubr.f32.mxu0 %v287
    %644 = vmatmul.mubr.f32.gmra.mrb[0].mxu0 %v283
    %v645 = vpop.f32.mrb[0].mxu0
    %v646 = vadd.f32 0.0, %v645
    %v647 = vpop.f32.mrb[0].mxu0
    %648 = vdwg.mxu0
    %649 = vmatprep.subr.mxu0 0.0
    %650 = vmatpush1.msra.mxu0 %v203
    %651 = vmatprep.subr.mxu0 0.0
    %652 = vmatpush1.msra.mxu0 %v208
    %653 = vmatprep.subr.mxu0 0.0
    %654 = vmatpush1.msra.mxu0 %v213
    %655 = vmatprep.subr.mxu0 0.0
    %656 = vmatpush1.msra.mxu0 %v218
    %657 = vmatprep.subr.mxu0 0.0
    %658 = vmatpush1.msra.mxu0 %v223
    %659 = vmatprep.subr.mxu0 0.0
    %660 = vmatpush1.msra.mxu0 %v228
    %661 = vmatprep.subr.mxu0 0.0
    %662 = vmatpush1.msra.mxu0 %v233
    %663 = vmatprep.subr.mxu0 0.0
    %664 = vmatpush1.msra.mxu0 %v238
    %665 = vmatprep.subr.mxu0 0.0
    %666 = vmatpush1.msra.mxu0 %v243
    %667 = vmatprep.subr.mxu0 0.0
    %668 = vmatpush1.msra.mxu0 %v248
    %669 = vmatprep.subr.mxu0 0.0
    %670 = vmatpush1.msra.mxu0 %v253
    %671 = vmatprep.subr.mxu0 0.0
    %672 = vmatpush1.msra.mxu0 %v258
    %673 = vmatprep.subr.mxu0 0.0
    %674 = vmatpush1.msra.mxu0 %v263
    %675 = vmatprep.subr.mxu0 0.0
    %676 = vmatpush1.msra.mxu0 %v268
    %677 = vmatprep.subr.mxu0 0.0
    %678 = vmatpush1.msra.mxu0 %v273
    %679 = vmatprep.subr.mxu0 0.0
    %680 = vmatpush1.msra.mxu0 %v278
    %681 = vmatprep.subr.mxu0 0.0
    %682 = vmatpush1.msra.mxu0 0.0
    %683 = vmatprep.subr.mxu0 0.0
    %684 = vmatpush1.msra.mxu0 0.0
    %685 = vmatprep.subr.mxu0 0.0
    %686 = vmatpush1.msra.mxu0 0.0
    %687 = vmatprep.subr.mxu0 0.0
    %688 = vmatpush1.msra.mxu0 0.0
    %689 = vmatprep.subr.mxu0 0.0
    %690 = vmatpush1.msra.mxu0 0.0
    %691 = vmatprep.subr.mxu0 0.0
    %692 = vmatpush1.msra.mxu0 0.0
    %693 = vmatprep.subr.mxu0 0.0
    %694 = vmatpush1.msra.mxu0 0.0
    %695 = vmatprep.subr.mxu0 0.0
    %696 = vmatpush1.msra.mxu0 0.0
    %697 = vmatprep.subr.mxu0 0.0
    %698 = vmatpush1.msra.mxu0 0.0
    %699 = vmatprep.subr.mxu0 0.0
    %700 = vmatpush1.msra.mxu0 0.0
    %701 = vmatprep.subr.mxu0 0.0
    %702 = vmatpush1.msra.mxu0 0.0
    %703 = vmatprep.subr.mxu0 0.0
    %704 = vmatpush1.msra.mxu0 0.0
    %705 = vmatprep.subr.mxu0 0.0
    %706 = vmatpush1.msra.mxu0 0.0
    %707 = vmatprep.subr.mxu0 0.0
    %708 = vmatpush1.msra.mxu0 0.0
    %709 = vmatprep.subr.mxu0 0.0
    %710 = vmatpush1.msra.mxu0 0.0
    %711 = vmatprep.subr.mxu0 0.0
    %712 = vmatpush1.msra.mxu0 0.0
    %713 = vmatprep.mubr.f32.mxu0 0.0
    %714 = vmatmul.mubr.f32.gmra.mrb[0].mxu0 %v291
    %v715 = vpop.f32.mrb[0].mxu0
    %v716 = vadd.f32 %v646, %v715
    %v717 = vpop.f32.mrb[0].mxu0
    %718 = vdwg.mxu0
    %v724 = vcombine.low %v433, %v435
    %v725 = vcombine.low %v575, %v577
    %v727 = vunpack.c.l.s4 1966171168
    %v728 = vunpack.c.0.s8 %v727
    %v729 = vlaneseq
    %v730 = vshrl.u32 %v729, 7
    %v731 = vsub.s32 %v728, %v730
    %v732 = vrot.slane %v724, %v731
    %v734 = vunpack.c.l.s4 1966171168
    %v735 = vunpack.c.0.s8 %v734
    %v736 = vlaneseq
    %v737 = vshrl.u32 %v736, 7
    %v738 = vsub.s32 %v735, %v737
    %v739 = vrot.slane %v725, %v738
    %v741 = vunpack.c.l.s4 1966171168
    %v742 = vunpack.c.0.s8 %v741
    %v743 = vlaneseq
    %v744 = vshrl.u32 %v743, 7
    %v745 = vsub.s32 %v742, %v744
    %v746 = vrot.slane %v716, %v745
    %v747 = vcombine.low %v732, %v739
    %v749 = vunpack.c.l.s4 1966171168
    %v750 = vunpack.c.0.s8 %v749
    %v751 = vlaneseq
    %v752 = vshrl.u32 %v751, 7
    %v753 = vsub.s32 %v750, %v752
    %v754 = vrot.slane %v747, %v753
    %v756 = vunpack.c.l.s4 1966171168
    %v757 = vunpack.c.0.s8 %v756
    %v758 = vlaneseq
    %v759 = vshrl.u32 %v758, 7
    %v760 = vsub.s32 %v757, %v759
    %v761 = vrot.slane %v746, %v760
    %v762 = vcombine.low %v754, %v761
    %v764 = vlaneseq
    %vm765 = vcmp.ge.s32.totalorder %v764, 0
    %vm766 = vcmp.lt.s32.totalorder %v764, 640
    %vm767 = vmand %vm765, %vm766
    %768 = vst.msk [vmem:[#allocation7] sm:$0x1f] %vm767, %v762
    // Predicated region
    $region18: #{tpu_custom_call.1} parent=1 // pred_check
      _
    $region19: #{tpu_custom_call.1} parent=1 // pred_check_branch
      %770 = sbr.rel (0) target = $region21
    $region20: #{tpu_custom_call.1} parent=1 // pred_region
      %s772 = ssub.s32 80, 80
      %773 = vsyncadd [#allocation4], %s772
      %s775 = sshll.u32 [#allocation7], 4
      %s776 = int_to_ptr.vmem [resolvable:$true] %s775
      %778 = dma.vmem_to_hbm [thread:$0]  %s776, 80, %s2, [#allocation4]
    $region21: #{tpu_custom_call.1} parent=1 // pred_fallthru
      _
    // Predicated region
    $region22: #{tpu_custom_call.1} parent=1 // pred_check
      _
    $region23: #{tpu_custom_call.1} parent=1 // pred_check_branch
      %780 = sbr.rel (0) target = $region25
    $region24: #{tpu_custom_call.1} parent=1 // pred_region
      %781 = dma.done [#allocation4], 80
    $region25: #{tpu_custom_call.1} parent=1 // pred_fallthru
      _
    %782 = vsyncpa [#allocation3], 1
    %783 = vsyncpa [#allocation6], 1
    %784 = vsyncpa [#allocation4], 1

</llo_original>
